<compile_context>
chip_gen: v7x
topology: tpu7x:2x2x1
jax: 0.10.0
libtpu: 0.0.40
codegen_flags: <defaults>
</compile_context>

<pallas_src>
import jax
import jax.numpy as jnp
from jax.experimental import pallas as pl
from jax.experimental.pallas import tpu as pltpu

N_IN = 5            # input features
N_OUT = 4           # output classes (the 16/16 hidden layers are fused away)
LANES = 128
MIN_TILE = 1024     # 8 sublanes * 128 lanes -> dense (8,128) slabs
MAX_TILE = 128 * 1024


def fused_affine_kernel(w_ref, b_ref, x_ref, o_ref):
    """o[n] = sum_k w[n,k] * x[k] + b[n], on dense [bm//128, 128] slabs.

    w_ref : SMEM [N_OUT, N_IN]           fused weight (scalar reads)
    b_ref : SMEM [N_OUT]                 fused bias   (scalar reads)
    x_ref : VMEM [N_IN,  bm//128, 128]   lane+sublane dense input tile
    o_ref : VMEM [N_OUT, bm//128, 128]   lane+sublane dense output tile
    """
    xs = [x_ref[k] for k in range(N_IN)]          # N_IN dense (8,128)-tiled slabs
    for n in range(N_OUT):                        # 4x5 = 20 scalar*slab FMAs (VPU)
        acc = xs[0] * w_ref[n, 0] + b_ref[n]
        for k in range(1, N_IN):
            acc = acc + xs[k] * w_ref[n, k]
        o_ref[n] = acc


def _pick_tile(b_pad):
    """Batch tile in lanes: multiple of MIN_TILE, <= min(b_pad, MAX_TILE);
    halved when possible so the grid has >= 2 blocks (v7x 2-TC occupancy)."""
    bm = min(b_pad, MAX_TILE)
    if b_pad // bm < 2 and b_pad >= 2 * MIN_TILE:
        bm = max(MIN_TILE, ((b_pad // 2) // MIN_TILE) * MIN_TILE)
    return bm


def classifier_v2_forward_fm(x_fm, w_fused_t, b_fused):
    """Feature-major fast path (no wrapper transposes).

    x_fm      : [N_IN, B_pad//128, 128] f32, batch on (sublane, lane) axes
    w_fused_t : [N_OUT, N_IN] f32
    b_fused   : [N_OUT] f32
    returns   : [N_OUT, B_pad//128, 128] f32
    """
    _, n_sub, lanes = x_fm.shape
    assert lanes == LANES and n_sub % (MIN_TILE // LANES) == 0
    b_pad = n_sub * LANES
    bm = _pick_tile(b_pad)
    sb = bm // LANES
    n_blocks = pl.cdiv(b_pad, bm)

    cost = pl.CostEstimate(
        flops=2 * b_pad * N_IN * N_OUT,
        transcendentals=0,
        bytes_accessed=4 * (b_pad * (N_IN + N_OUT) + N_IN * N_OUT + N_OUT),
    )

    return pl.pallas_call(
        fused_affine_kernel,
        out_shape=jax.ShapeDtypeStruct((N_OUT, n_sub, LANES), jnp.float32),
        grid=(n_blocks,),
        in_specs=[
            pl.BlockSpec(memory_space=pltpu.MemorySpace.SMEM),      # fused W (scalars)
            pl.BlockSpec(memory_space=pltpu.MemorySpace.SMEM),      # fused b (scalars)
            pl.BlockSpec((N_IN, sb, LANES), lambda i: (0, i, 0)),   # x tile, batch dense
        ],
        out_specs=pl.BlockSpec((N_OUT, sb, LANES), lambda i: (0, i, 0)),
        compiler_params=pltpu.CompilerParams(
            dimension_semantics=("parallel",),        # megacore / v7x 2-TC batch split
            vmem_limit_bytes=32 * 1024 * 1024,        # 2*(5+4)*bm*4 <= ~9.4 MiB at max bm
            allow_input_fusion=[False, False, True],  # let XLA fold pad/transpose into x
        ),
        cost_estimate=cost,
    )(w_fused_t, b_fused, x_fm)


def fuse_params(params):
    """Fuse the activation-free 3-layer MLP into one affine map (tiny XLA ops)."""
    f32 = jnp.float32
    w1, b1 = params["w1"], params["b1"]
    w2, b2 = params["w2"], params["b2"]
    w3, b3 = params["w3"], params["b3"]
    w_fused = (w1 @ w2 @ w3).astype(f32)               # [5, 4]
    b_fused = ((b1 @ w2 + b2) @ w3 + b3).astype(f32)   # [1, 4]
    return w_fused.T, b_fused.reshape(N_OUT)           # ([4, 5], [4])


def classifier_v2_forward(x, params):
    """Forward pass of ClassifierV2 in the original layout. x: [B,5] f32 -> [B,4] f32."""
    B = x.shape[0]
    w_t, b_vec = fuse_params(params)

    b_pad = pl.cdiv(B, MIN_TILE) * MIN_TILE            # clamp padding to round_up(B,1024)
    # Batch-major -> feature-major transpose is the only materialized wrapper copy;
    # producers that already emit [5, B] should call classifier_v2_forward_fm directly.
    x_pad = jnp.pad(x.astype(jnp.float32), ((0, b_pad - B), (0, 0)))
    x_fm = x_pad.T.reshape(N_IN, b_pad // LANES, LANES)   # contiguous reshape, no copy

    out_fm = classifier_v2_forward_fm(x_fm, w_t, b_vec)   # [4, b_pad//128, 128]
    return out_fm.reshape(N_OUT, b_pad).T[:B]              # [B, 4]


def init_params(key):
    """Deterministic params matching nn.Linear shapes.

    PyTorch nn.Linear(in, out) stores weight [out, in]; we store the transpose
    [in, out] so the forward is x @ W + b.
    """
    k1, k2, k3, k4, k5, k6 = jax.random.split(key, 6)

    def lin(kw, kb, fan_in, fan_out):
        bound = 1.0 / jnp.sqrt(fan_in)
        w = jax.random.uniform(kw, (fan_in, fan_out), jnp.float32, -bound, bound)
        b = jax.random.uniform(kb, (1, fan_out), jnp.float32, -bound, bound)
        return w, b

    w1, b1 = lin(k1, k2, 5, 16)
    w2, b2 = lin(k3, k4, 16, 16)
    w3, b3 = lin(k5, k6, 16, 4)
    return {"w1": w1, "b1": b1, "w2": w2, "b2": b2, "w3": w3, "b3": b3}


if __name__ == "__main__":
    key = jax.random.PRNGKey(0)
    kx, kp = jax.random.split(key)

    batch = 1200   # small, but exercises batch padding + a 2-block "parallel" grid
    x = jax.random.normal(kx, (batch, N_IN), dtype=jnp.float32)
    params = init_params(kp)

    out = jax.block_until_ready(classifier_v2_forward(x, params))

    # Pure-JAX reference using the ORIGINAL (unfused) layer chain.
    ref = x
    for wn, bn in (("w1", "b1"), ("w2", "b2"), ("w3", "b3")):
        ref = ref @ params[wn] + params[bn]

    assert out.shape == (batch, N_OUT)
    max_err = float(jnp.max(jnp.abs(out - ref)))
    assert jnp.allclose(out, ref, atol=1e-4, rtol=1e-4), max_err

    print("KERNEL_OK")
</pallas_src>

<mosaic_0001>
module attributes {stable_mosaic.version = 11 : i64} {
  func.func @fused_affine_kernel(%arg0: i32, %arg1: memref<4x5xf32, #tpu.memory_space<smem>>, %arg2: memref<4xf32, #tpu.memory_space<smem>>, %arg3: memref<5x8x128xf32, #tpu.memory_space<vmem>>, %arg4: memref<4x8x128xf32, #tpu.memory_space<vmem>>) attributes {dimension_semantics = [#tpu.dimension_semantics<parallel>], iteration_bounds = array<i64: 2>, scalar_prefetch = 0 : i64, scratch_operands = 0 : i64, tpu.core_type = #tpu.core_type<tc>, window_params = [{transform_indices = @transform_0, window_bounds = array<i64: 4, 5>}, {transform_indices = @transform_1, window_bounds = array<i64: 4>}, {transform_indices = @transform_2, window_bounds = array<i64: 5, 8, 128>}, {transform_indices = @transform_3, window_bounds = array<i64: 4, 8, 128>}]} {
    %c0 = arith.constant 0 : index
    %c0_0 = arith.constant 0 : index
    %c0_1 = arith.constant 0 : index
    %0 = vector.load %arg3[%c0, %c0_0, %c0_1] : memref<5x8x128xf32, #tpu.memory_space<vmem>>, vector<1x8x128xf32>
    %1 = vector.shape_cast %0 : vector<1x8x128xf32> to vector<8x128xf32>
    %c1 = arith.constant 1 : index
    %c0_2 = arith.constant 0 : index
    %c0_3 = arith.constant 0 : index
    %2 = vector.load %arg3[%c1, %c0_2, %c0_3] : memref<5x8x128xf32, #tpu.memory_space<vmem>>, vector<1x8x128xf32>
    %3 = vector.shape_cast %2 : vector<1x8x128xf32> to vector<8x128xf32>
    %c2 = arith.constant 2 : index
    %c0_4 = arith.constant 0 : index
    %c0_5 = arith.constant 0 : index
    %4 = vector.load %arg3[%c2, %c0_4, %c0_5] : memref<5x8x128xf32, #tpu.memory_space<vmem>>, vector<1x8x128xf32>
    %5 = vector.shape_cast %4 : vector<1x8x128xf32> to vector<8x128xf32>
    %c3 = arith.constant 3 : index
    %c0_6 = arith.constant 0 : index
    %c0_7 = arith.constant 0 : index
    %6 = vector.load %arg3[%c3, %c0_6, %c0_7] : memref<5x8x128xf32, #tpu.memory_space<vmem>>, vector<1x8x128xf32>
    %7 = vector.shape_cast %6 : vector<1x8x128xf32> to vector<8x128xf32>
    %c4 = arith.constant 4 : index
    %c0_8 = arith.constant 0 : index
    %c0_9 = arith.constant 0 : index
    %8 = vector.load %arg3[%c4, %c0_8, %c0_9] : memref<5x8x128xf32, #tpu.memory_space<vmem>>, vector<1x8x128xf32>
    %9 = vector.shape_cast %8 : vector<1x8x128xf32> to vector<8x128xf32>
    %c0_10 = arith.constant 0 : index
    %c0_11 = arith.constant 0 : index
    %10 = memref.load %arg1[%c0_10, %c0_11] : memref<4x5xf32, #tpu.memory_space<smem>>
    %11 = vector.broadcast %10 : f32 to vector<8x128xf32>
    %12 = arith.mulf %1, %11 : vector<8x128xf32>
    %c0_12 = arith.constant 0 : index
    %13 = memref.load %arg2[%c0_12] : memref<4xf32, #tpu.memory_space<smem>>
    %14 = vector.broadcast %13 : f32 to vector<8x128xf32>
    %15 = arith.addf %12, %14 : vector<8x128xf32>
    %c0_13 = arith.constant 0 : index
    %c1_14 = arith.constant 1 : index
    %16 = memref.load %arg1[%c0_13, %c1_14] : memref<4x5xf32, #tpu.memory_space<smem>>
    %17 = vector.broadcast %16 : f32 to vector<8x128xf32>
    %18 = arith.mulf %3, %17 : vector<8x128xf32>
    %19 = arith.addf %15, %18 : vector<8x128xf32>
    %c0_15 = arith.constant 0 : index
    %c2_16 = arith.constant 2 : index
    %20 = memref.load %arg1[%c0_15, %c2_16] : memref<4x5xf32, #tpu.memory_space<smem>>
    %21 = vector.broadcast %20 : f32 to vector<8x128xf32>
    %22 = arith.mulf %5, %21 : vector<8x128xf32>
    %23 = arith.addf %19, %22 : vector<8x128xf32>
    %c0_17 = arith.constant 0 : index
    %c3_18 = arith.constant 3 : index
    %24 = memref.load %arg1[%c0_17, %c3_18] : memref<4x5xf32, #tpu.memory_space<smem>>
    %25 = vector.broadcast %24 : f32 to vector<8x128xf32>
    %26 = arith.mulf %7, %25 : vector<8x128xf32>
    %27 = arith.addf %23, %26 : vector<8x128xf32>
    %c0_19 = arith.constant 0 : index
    %c4_20 = arith.constant 4 : index
    %28 = memref.load %arg1[%c0_19, %c4_20] : memref<4x5xf32, #tpu.memory_space<smem>>
    %29 = vector.broadcast %28 : f32 to vector<8x128xf32>
    %30 = arith.mulf %9, %29 : vector<8x128xf32>
    %31 = arith.addf %27, %30 : vector<8x128xf32>
    %c0_21 = arith.constant 0 : index
    %c0_22 = arith.constant 0 : index
    %c0_23 = arith.constant 0 : index
    %32 = vector.load %arg4[%c0_21, %c0_22, %c0_23] : memref<4x8x128xf32, #tpu.memory_space<vmem>>, vector<1x8x128xf32>
    %33 = vector.shape_cast %32 : vector<1x8x128xf32> to vector<8x128xf32>
    %34 = vector.shape_cast %31 : vector<8x128xf32> to vector<1x8x128xf32>
    tpu.vector_store %arg4[%c0_21, %c0_22, %c0_23], %34 {strides = array<i32>} : memref<4x8x128xf32, #tpu.memory_space<vmem>>, vector<1x8x128xf32>,
    %c1_24 = arith.constant 1 : index
    %c0_25 = arith.constant 0 : index
    %35 = memref.load %arg1[%c1_24, %c0_25] : memref<4x5xf32, #tpu.memory_space<smem>>
    %36 = vector.broadcast %35 : f32 to vector<8x128xf32>
    %37 = arith.mulf %1, %36 : vector<8x128xf32>
    %c1_26 = arith.constant 1 : index
    %38 = memref.load %arg2[%c1_26] : memref<4xf32, #tpu.memory_space<smem>>
    %39 = vector.broadcast %38 : f32 to vector<8x128xf32>
    %40 = arith.addf %37, %39 : vector<8x128xf32>
    %c1_27 = arith.constant 1 : index
    %c1_28 = arith.constant 1 : index
    %41 = memref.load %arg1[%c1_27, %c1_28] : memref<4x5xf32, #tpu.memory_space<smem>>
    %42 = vector.broadcast %41 : f32 to vector<8x128xf32>
    %43 = arith.mulf %3, %42 : vector<8x128xf32>
    %44 = arith.addf %40, %43 : vector<8x128xf32>
    %c1_29 = arith.constant 1 : index
    %c2_30 = arith.constant 2 : index
    %45 = memref.load %arg1[%c1_29, %c2_30] : memref<4x5xf32, #tpu.memory_space<smem>>
    %46 = vector.broadcast %45 : f32 to vector<8x128xf32>
    %47 = arith.mulf %5, %46 : vector<8x128xf32>
    %48 = arith.addf %44, %47 : vector<8x128xf32>
    %c1_31 = arith.constant 1 : index
    %c3_32 = arith.constant 3 : index
    %49 = memref.load %arg1[%c1_31, %c3_32] : memref<4x5xf32, #tpu.memory_space<smem>>
    %50 = vector.broadcast %49 : f32 to vector<8x128xf32>
    %51 = arith.mulf %7, %50 : vector<8x128xf32>
    %52 = arith.addf %48, %51 : vector<8x128xf32>
    %c1_33 = arith.constant 1 : index
    %c4_34 = arith.constant 4 : index
    %53 = memref.load %arg1[%c1_33, %c4_34] : memref<4x5xf32, #tpu.memory_space<smem>>
    %54 = vector.broadcast %53 : f32 to vector<8x128xf32>
    %55 = arith.mulf %9, %54 : vector<8x128xf32>
    %56 = arith.addf %52, %55 : vector<8x128xf32>
    %c1_35 = arith.constant 1 : index
    %c0_36 = arith.constant 0 : index
    %c0_37 = arith.constant 0 : index
    %57 = vector.load %arg4[%c1_35, %c0_36, %c0_37] : memref<4x8x128xf32, #tpu.memory_space<vmem>>, vector<1x8x128xf32>
    %58 = vector.shape_cast %57 : vector<1x8x128xf32> to vector<8x128xf32>
    %59 = vector.shape_cast %56 : vector<8x128xf32> to vector<1x8x128xf32>
    tpu.vector_store %arg4[%c1_35, %c0_36, %c0_37], %59 {strides = array<i32>} : memref<4x8x128xf32, #tpu.memory_space<vmem>>, vector<1x8x128xf32>,
    %c2_38 = arith.constant 2 : index
    %c0_39 = arith.constant 0 : index
    %60 = memref.load %arg1[%c2_38, %c0_39] : memref<4x5xf32, #tpu.memory_space<smem>>
    %61 = vector.broadcast %60 : f32 to vector<8x128xf32>
    %62 = arith.mulf %1, %61 : vector<8x128xf32>
    %c2_40 = arith.constant 2 : index
    %63 = memref.load %arg2[%c2_40] : memref<4xf32, #tpu.memory_space<smem>>
    %64 = vector.broadcast %63 : f32 to vector<8x128xf32>
    %65 = arith.addf %62, %64 : vector<8x128xf32>
    %c2_41 = arith.constant 2 : index
    %c1_42 = arith.constant 1 : index
    %66 = memref.load %arg1[%c2_41, %c1_42] : memref<4x5xf32, #tpu.memory_space<smem>>
    %67 = vector.broadcast %66 : f32 to vector<8x128xf32>
    %68 = arith.mulf %3, %67 : vector<8x128xf32>
    %69 = arith.addf %65, %68 : vector<8x128xf32>
    %c2_43 = arith.constant 2 : index
    %c2_44 = arith.constant 2 : index
    %70 = memref.load %arg1[%c2_43, %c2_44] : memref<4x5xf32, #tpu.memory_space<smem>>
    %71 = vector.broadcast %70 : f32 to vector<8x128xf32>
    %72 = arith.mulf %5, %71 : vector<8x128xf32>
    %73 = arith.addf %69, %72 : vector<8x128xf32>
    %c2_45 = arith.constant 2 : index
    %c3_46 = arith.constant 3 : index
    %74 = memref.load %arg1[%c2_45, %c3_46] : memref<4x5xf32, #tpu.memory_space<smem>>
    %75 = vector.broadcast %74 : f32 to vector<8x128xf32>
    %76 = arith.mulf %7, %75 : vector<8x128xf32>
    %77 = arith.addf %73, %76 : vector<8x128xf32>
    %c2_47 = arith.constant 2 : index
    %c4_48 = arith.constant 4 : index
    %78 = memref.load %arg1[%c2_47, %c4_48] : memref<4x5xf32, #tpu.memory_space<smem>>
    %79 = vector.broadcast %78 : f32 to vector<8x128xf32>
    %80 = arith.mulf %9, %79 : vector<8x128xf32>
    %81 = arith.addf %77, %80 : vector<8x128xf32>
    %c2_49 = arith.constant 2 : index
    %c0_50 = arith.constant 0 : index
    %c0_51 = arith.constant 0 : index
    %82 = vector.load %arg4[%c2_49, %c0_50, %c0_51] : memref<4x8x128xf32, #tpu.memory_space<vmem>>, vector<1x8x128xf32>
    %83 = vector.shape_cast %82 : vector<1x8x128xf32> to vector<8x128xf32>
    %84 = vector.shape_cast %81 : vector<8x128xf32> to vector<1x8x128xf32>
    tpu.vector_store %arg4[%c2_49, %c0_50, %c0_51], %84 {strides = array<i32>} : memref<4x8x128xf32, #tpu.memory_space<vmem>>, vector<1x8x128xf32>,
    %c3_52 = arith.constant 3 : index
    %c0_53 = arith.constant 0 : index
    %85 = memref.load %arg1[%c3_52, %c0_53] : memref<4x5xf32, #tpu.memory_space<smem>>
    %86 = vector.broadcast %85 : f32 to vector<8x128xf32>
    %87 = arith.mulf %1, %86 : vector<8x128xf32>
    %c3_54 = arith.constant 3 : index
    %88 = memref.load %arg2[%c3_54] : memref<4xf32, #tpu.memory_space<smem>>
    %89 = vector.broadcast %88 : f32 to vector<8x128xf32>
    %90 = arith.addf %87, %89 : vector<8x128xf32>
    %c3_55 = arith.constant 3 : index
    %c1_56 = arith.constant 1 : index
    %91 = memref.load %arg1[%c3_55, %c1_56] : memref<4x5xf32, #tpu.memory_space<smem>>
    %92 = vector.broadcast %91 : f32 to vector<8x128xf32>
    %93 = arith.mulf %3, %92 : vector<8x128xf32>
    %94 = arith.addf %90, %93 : vector<8x128xf32>
    %c3_57 = arith.constant 3 : index
    %c2_58 = arith.constant 2 : index
    %95 = memref.load %arg1[%c3_57, %c2_58] : memref<4x5xf32, #tpu.memory_space<smem>>
    %96 = vector.broadcast %95 : f32 to vector<8x128xf32>
    %97 = arith.mulf %5, %96 : vector<8x128xf32>
    %98 = arith.addf %94, %97 : vector<8x128xf32>
    %c3_59 = arith.constant 3 : index
    %c3_60 = arith.constant 3 : index
    %99 = memref.load %arg1[%c3_59, %c3_60] : memref<4x5xf32, #tpu.memory_space<smem>>
    %100 = vector.broadcast %99 : f32 to vector<8x128xf32>
    %101 = arith.mulf %7, %100 : vector<8x128xf32>
    %102 = arith.addf %98, %101 : vector<8x128xf32>
    %c3_61 = arith.constant 3 : index
    %c4_62 = arith.constant 4 : index
    %103 = memref.load %arg1[%c3_61, %c4_62] : memref<4x5xf32, #tpu.memory_space<smem>>
    %104 = vector.broadcast %103 : f32 to vector<8x128xf32>
    %105 = arith.mulf %9, %104 : vector<8x128xf32>
    %106 = arith.addf %102, %105 : vector<8x128xf32>
    %c3_63 = arith.constant 3 : index
    %c0_64 = arith.constant 0 : index
    %c0_65 = arith.constant 0 : index
    %107 = vector.load %arg4[%c3_63, %c0_64, %c0_65] : memref<4x8x128xf32, #tpu.memory_space<vmem>>, vector<1x8x128xf32>
    %108 = vector.shape_cast %107 : vector<1x8x128xf32> to vector<8x128xf32>
    %109 = vector.shape_cast %106 : vector<8x128xf32> to vector<1x8x128xf32>
    tpu.vector_store %arg4[%c3_63, %c0_64, %c0_65], %109 {strides = array<i32>} : memref<4x8x128xf32, #tpu.memory_space<vmem>>, vector<1x8x128xf32>,
    return
  }
  func.func @transform_0(%arg0: i32) -> (i32, i32) {
    %c0_i32 = arith.constant 0 : i32
    %c0_i32_0 = arith.constant 0 : i32
    %c0_i32_1 = arith.constant 0 : i32
    return %c0_i32, %c0_i32_0 : i32, i32
  }
  func.func @transform_1(%arg0: i32) -> i32 {
    %c0_i32 = arith.constant 0 : i32
    %c0_i32_0 = arith.constant 0 : i32
    return %c0_i32 : i32
  }
  func.func @transform_2(%arg0: i32) -> (i32, i32, i32) {
    %c0_i32 = arith.constant 0 : i32
    %c0_i32_0 = arith.constant 0 : i32
    %c0_i32_1 = arith.constant 0 : i32
    return %c0_i32, %arg0, %c0_i32_0 : i32, i32, i32
  }
  func.func @transform_3(%arg0: i32) -> (i32, i32, i32) {
    %c0_i32 = arith.constant 0 : i32
    %c0_i32_0 = arith.constant 0 : i32
    %c0_i32_1 = arith.constant 0 : i32
    return %c0_i32, %arg0, %c0_i32_0 : i32, i32, i32
  }
}

</mosaic_0001>

<llo_original>
// kernel: tpu_custom_call.1
$region0: #{tpu_custom_call.1}
  #allocation0 [shape = 'u32[]', space=smem, size = 0x4, offset = 0x4, fixed_abs, tag = 'smem constant byte address 0x4 - core index']
  #allocation1 [shape = 'u32[144,128]{1,0:T(1,128)}', space=vmem, size = 0x12000, scoped, tag = 'internal scratch']
  %s0 = inlined_call_operand.hbm [shape: f32[4,5], index: 0, kind: input, shape index: {}]
  %s1 = inlined_call_operand.vmem [shape: f32[4], index: 1, kind: input, shape index: {}]
  %s2 = inlined_call_operand.hbm [shape: f32[5,16,128], index: 2, kind: input, shape index: {}]
  %s3 = inlined_call_operand.hbm [shape: f32[4,16,128], index: 3, kind: output, shape index: {}]
  %s4 = sld [smem:[#allocation0]]
  $region57: #{tpu_custom_call.1} parent=0
    _
  %s6 = ssub.s32 1, %s4
  %s7 = scalar_select 0, %s6, %s4
  $region1: #{tpu_custom_call.1} parent=0
    #allocation2 [shape = 'u8[2048]{0}', space=smem, size = 0x800, scoped, tag = 'input window, operand 0, single buffered']
    #allocation3 [shape = 's32[2]{0}', space=sflag, size = 0x8, scoped, tag = 'scoped memory for tpu_custom_call.1']
    #allocation4 [shape = 's32[2]{0}', space=sflag, size = 0x8, scoped, tag = 'scoped memory for tpu_custom_call.1']
    #allocation5 [shape = 's32[2]{0}', space=sflag, size = 0x8, scoped, tag = 'scoped memory for tpu_custom_call.1']
    #allocation6 [shape = 's32[2]{0}', space=sflag, size = 0x8, scoped, tag = 'scoped memory for tpu_custom_call.1']
    #allocation7 [shape = 'u8[512]{0}', space=smem, size = 0x200, scoped, tag = 'input window, operand 1, single buffered']
    #allocation8 [shape = 'u8[40960]{0}', space=vmem, size = 0xa000, scoped, tag = 'input window, operand 2']
    #allocation9 [shape = 'u8[32768]{0}', space=vmem, size = 0x8000, scoped, tag = 'output window, operand 0']
    %8 = vsyncpa [#allocation5], 0
    %9 = vsyncpa [#allocation6], 0
    %10 = vsyncpa [#allocation3], 0
    %s11 = scalar_lea.sflag [#allocation3], 1
    %12 = vsyncpa %s11, 0
    %13 = vsyncpa [#allocation4], 0
    %s14 = scalar_lea.sflag [#allocation4], 1
    %15 = vsyncpa %s14, 0
    loop: start=0, step=1, limit=4
    $region2: #{tpu_custom_call.1} parent=1 // loop_pre_header
      _
    $region3: #{tpu_custom_call.1} parent=1 // loop_header
      %s17 = sphi 0, %s21
      %p18 = scmp.ge.s32.totalorder %s17, 4
      %s25 = sphi 0, %s25
      %s27 = sphi 0, %s25
      %s28 = sphi 0, %s27
      %s42 = sphi 0, %s28
      %s46 = sphi 0, %s46
      %s48 = sphi 0, %s46
      %s49 = sphi 0, %s48
      %s63 = sphi 0, %s49
      %s69 = sphi 0, %s71
      %s72 = sphi 0, %s69
      %s73 = sphi 0, %s72
      %s89 = sphi 0, %s73
      %s95 = sphi 0, %s97
      %s98 = sphi 0, %s95
      %s99 = sphi 0, %s98
      %s115 = sphi 0, %s99
    $region4: #{tpu_custom_call.1} parent=1 // loop_header_branch
      %20 = sbr.rel (%p18) target = $region8
    $region5: #{tpu_custom_call.1} parent=1 // loop_body
      %s22 = ssub.s32 %s17, 1
      %s23 = ssub.s32 %s17, 2
      %s24 = sadd.s32 %s17, 1
      %s26 = sadd.s32 %s25, 1
      %p29 = scmp.eq.s32.totalorder %s17, 1
      %p30 = scmp.ne.s32.totalorder %s25, %s27
      %p31 = scmp.eq.s32.totalorder %s17, 0
      %p32 = por %p30, %p31
      %p33 = scmp.ne.s32.totalorder %s25, %s27
      %p34 = scmp.eq.s32.totalorder %s22, 1
      %p35 = por %p33, %p34
      %p36 = scmp.ne.s32.totalorder %s27, %s28
      %p37 = scmp.eq.s32.totalorder %s22, 0
      %p38 = por %p36, %p37
      %p39 = scmp.ne.s32.totalorder %s27, %s28
      %p40 = scmp.eq.s32.totalorder %s23, 1
      %p41 = por %p39, %p40
      %p43 = scmp.ne.s32.totalorder %s28, %s42
      %p44 = scmp.eq.s32.totalorder %s23, 0
      %p45 = por %p43, %p44
      %s47 = sadd.s32 %s46, 1
      %p50 = scmp.eq.s32.totalorder %s17, 1
      %p51 = scmp.ne.s32.totalorder %s46, %s48
      %p52 = scmp.eq.s32.totalorder %s17, 0
      %p53 = por %p51, %p52
      %p54 = scmp.ne.s32.totalorder %s46, %s48
      %p55 = scmp.eq.s32.totalorder %s22, 1
      %p56 = por %p54, %p55
      %p57 = scmp.ne.s32.totalorder %s48, %s49
      %p58 = scmp.eq.s32.totalorder %s22, 0
      %p59 = por %p57, %p58
      %p60 = scmp.ne.s32.totalorder %s48, %s49
      %p61 = scmp.eq.s32.totalorder %s23, 1
      %p62 = por %p60, %p61
      %p64 = scmp.ne.s32.totalorder %s49, %s63
      %p65 = scmp.eq.s32.totalorder %s23, 0
      %p66 = por %p64, %p65
      %s67 = ssub.s32 %s17, %s24
      %p68 = scmp.eq.s32.totalorder %s67, 0
      %s70 = sadd.s32 %s69, 1
      %s71 = scalar_select %p68, %s69, %s70
      %p74 = pneg %p68
      %p75 = scmp.eq.s32.totalorder %s17, 1
      %p76 = por %p74, %p75
      %p77 = scmp.ne.s32.totalorder %s69, %s72
      %p78 = scmp.eq.s32.totalorder %s17, 0
      %p79 = por %p77, %p78
      %p80 = scmp.ne.s32.totalorder %s69, %s72
      %p81 = scmp.eq.s32.totalorder %s22, 1
      %p82 = por %p80, %p81
      %p83 = scmp.ne.s32.totalorder %s72, %s73
      %p84 = scmp.eq.s32.totalorder %s22, 0
      %p85 = por %p83, %p84
      %p86 = scmp.ne.s32.totalorder %s72, %s73
      %p87 = scmp.eq.s32.totalorder %s23, 1
      %p88 = por %p86, %p87
      %p90 = scmp.ne.s32.totalorder %s73, %s89
      %p91 = scmp.eq.s32.totalorder %s23, 0
      %p92 = por %p90, %p91
      %s93 = ssub.s32 %s17, %s24
      %p94 = scmp.eq.s32.totalorder %s93, 0
      %s96 = sadd.s32 %s95, 1
      %s97 = scalar_select %p94, %s95, %s96
      %p100 = pneg %p94
      %p101 = scmp.eq.s32.totalorder %s17, 1
      %p102 = por %p100, %p101
      %p103 = scmp.ne.s32.totalorder %s95, %s98
      %p104 = scmp.eq.s32.totalorder %s17, 0
      %p105 = por %p103, %p104
      %p106 = scmp.ne.s32.totalorder %s95, %s98
      %p107 = scmp.eq.s32.totalorder %s22, 1
      %p108 = por %p106, %p107
      %p109 = scmp.ne.s32.totalorder %s98, %s99
      %p110 = scmp.eq.s32.totalorder %s22, 0
      %p111 = por %p109, %p110
      %p112 = scmp.ne.s32.totalorder %s98, %s99
      %p113 = scmp.eq.s32.totalorder %s23, 1
      %p114 = por %p112, %p113
      %p116 = scmp.ne.s32.totalorder %s99, %s115
      %p117 = scmp.eq.s32.totalorder %s23, 0
      %p118 = por %p116, %p117
      %p119 = scmp.le.s32.totalorder 1, %s17
      %p120 = scmp.lt.s32.totalorder %s17, 3
      %p121 = pnand %p119, %p120
      %p122 = pneg %p121
      // Predicated region
      $region9: #{tpu_custom_call.1} parent=5 // pred_check
        _
      $region10: #{tpu_custom_call.1} parent=5 // pred_check_branch
        %124 = sbr.rel (%p121) target = $region12
      $region11: #{tpu_custom_call.1} parent=5 // pred_region
        %s125 = ssub.s32 %s17, 1
        // Predicated region
        $region13: #{tpu_custom_call.1} parent=11 // pred_check
          %p126 = pneg %p38
        $region14: #{tpu_custom_call.1} parent=11 // pred_check_branch
          %128 = sbr.rel (%p126) target = $region16
        $region15: #{tpu_custom_call.1} parent=11 // pred_region
          %s130 = ssub.s32 64, 64
          %131 = vsyncadd [#allocation5], %s130
          %134 = dma.hbm_to_smem %s0, 64, [#allocation2], [#allocation5]
        $region16: #{tpu_custom_call.1} parent=11 // pred_fallthru
          _
        // Predicated region
        $region17: #{tpu_custom_call.1} parent=11 // pred_check
          %p135 = pneg %p59
        $region18: #{tpu_custom_call.1} parent=11 // pred_check_branch
          %137 = sbr.rel (%p135) target = $region20
        $region19: #{tpu_custom_call.1} parent=11 // pred_region
          %s139 = ssub.s32 16, 16
          %140 = vsyncadd [#allocation6], %s139
          %s142 = sshll.u32 %s1, 4
          %s143 = int_to_ptr.vmem [resolvable:$true] %s142
          %145 = dma.vmem_to_smem %s143, 16, [#allocation7], [#allocation6]
        $region20: #{tpu_custom_call.1} parent=11 // pred_fallthru
          _
      $region12: #{tpu_custom_call.1} parent=5 // pred_fallthru
        _
      %p146 = scmp.lt.s32.totalorder %s17, 2
      // Predicated region
      $region21: #{tpu_custom_call.1} parent=5 // pred_check
        %p147 = pneg %p146
      $region22: #{tpu_custom_call.1} parent=5 // pred_check_branch
        %149 = sbr.rel (%p147) target = $region24
      $region23: #{tpu_custom_call.1} parent=5 // pred_region
        // Predicated region
        $region25: #{tpu_custom_call.1} parent=23 // pred_check
          %p150 = pneg %p79
        $region26: #{tpu_custom_call.1} parent=23 // pred_check_branch
          %152 = sbr.rel (%p150) target = $region28
        $region27: #{tpu_custom_call.1} parent=23 // pred_region
          %s153 = sand.u32 %s69, 1
          %s154 = scalar_lea.sflag [#allocation3], %s153
          %s155 = sand.u32 %s69, 1
          %s156 = smul.addr %s155, 40
          %s157 = scalar_lea.vmem [#allocation8], %s156
          %s159 = ssub.s32 640, 640
          %160 = vsyncadd %s154, %s159
          %s161 = smul.addr %s17, 128
          %s162 = scalar_lea.hbm %s2, %s161
          %s163 = sshll.u32 %s157, 4
          %s164 = int_to_ptr.vmem [resolvable:$true] %s163
          %169 = dma.hbm_to_vmem [thread:$0]  %s162, 640, %s164, %s154, 256, 128, 8
        $region28: #{tpu_custom_call.1} parent=23 // pred_fallthru
          _
      $region24: #{tpu_custom_call.1} parent=5 // pred_fallthru
        _
      %p170 = scmp.le.s32.totalorder 1, %s17
      %p171 = scmp.lt.s32.totalorder %s17, 3
      %p172 = pnand %p170, %p171
      %p173 = pneg %p172
      // Predicated region
      $region29: #{tpu_custom_call.1} parent=5 // pred_check
        _
      $region30: #{tpu_custom_call.1} parent=5 // pred_check_branch
        %175 = sbr.rel (%p172) target = $region32
      $region31: #{tpu_custom_call.1} parent=5 // pred_region
        %s176 = ssub.s32 %s17, 1
        // Predicated region
        $region33: #{tpu_custom_call.1} parent=31 // pred_check
          %p177 = pneg %p38
        $region34: #{tpu_custom_call.1} parent=31 // pred_check_branch
          %179 = sbr.rel (%p177) target = $region36
        $region35: #{tpu_custom_call.1} parent=31 // pred_region
          %180 = dma.done [#allocation5], 64
        $region36: #{tpu_custom_call.1} parent=31 // pred_fallthru
          _
        // Predicated region
        $region37: #{tpu_custom_call.1} parent=31 // pred_check
          %p181 = pneg %p59
        $region38: #{tpu_custom_call.1} parent=31 // pred_check_branch
          %183 = sbr.rel (%p181) target = $region40
        $region39: #{tpu_custom_call.1} parent=31 // pred_region
          %184 = dma.done [#allocation6], 16
        $region40: #{tpu_custom_call.1} parent=31 // pred_fallthru
          _
        %s185 = sand.u32 %s72, 1
        %s186 = scalar_lea.sflag [#allocation3], %s185
        %s187 = sand.u32 %s72, 1
        %s188 = smul.addr %s187, 40
        %s189 = scalar_lea.vmem [#allocation8], %s188
        // Predicated region
        $region41: #{tpu_custom_call.1} parent=31 // pred_check
          %p190 = pneg %p85
        $region42: #{tpu_custom_call.1} parent=31 // pred_check_branch
          %192 = sbr.rel (%p190) target = $region44
        $region43: #{tpu_custom_call.1} parent=31 // pred_region
          %193 = dma.done %s186, 640
        $region44: #{tpu_custom_call.1} parent=31 // pred_fallthru
          _
        %194 = sfence
        %p195 = pneg %p38
        %p196 = pneg %p35
        %p197 = pneg %p59
        %p198 = pneg %p56
        %s199 = sand.u32 %s72, 1
        %s200 = scalar_lea.sflag [#allocation3], %s199
        %s201 = sand.u32 %s72, 1
        %s202 = smul.addr %s201, 40
        %s203 = scalar_lea.vmem [#allocation8], %s202
        %p204 = pneg %p85
        %p205 = pneg %p82
        %p206 = pneg %p111
        %p207 = pneg %p108
        %s208 = sand.u32 %s98, 1
        %s209 = scalar_lea.sflag [#allocation4], %s208
        %s210 = sand.u32 %s98, 1
        %s211 = smul.addr %s210, 32
        %s212 = scalar_lea.vmem [#allocation9], %s211
        %v213 = vld [vmem:[%s189] sm:$0xff]
        %s214 = scalar_lea.vmem %s189, 8 [#allocation8]
        %v215 = vld [vmem:[%s214] sm:$0xff]
        %s216 = scalar_lea.vmem %s189, 16 [#allocation8]
        %v217 = vld [vmem:[%s216] sm:$0xff]
        %s218 = scalar_lea.vmem %s189, 24 [#allocation8]
        %v219 = vld [vmem:[%s218] sm:$0xff]
        %s220 = scalar_lea.vmem %s189, 32 [#allocation8]
        %v221 = vld [vmem:[%s220] sm:$0xff]
        %s222 = sld [smem:[#allocation2]]
        %v223 = vstv %s222
        %v224 = vmul.f32 %v213, %v223
        %s225 = sld [smem:[#allocation7]]
        %v226 = vstv %s225
        %v227 = vadd.f32 %v224, %v226
        %s228 = sld [smem:[#allocation2 + $0x1]]
        %v229 = vstv %s228
        %v230 = vmul.f32 %v215, %v229
        %v231 = vadd.f32 %v227, %v230
        %s232 = sld [smem:[#allocation2 + $0x2]]
        %v233 = vstv %s232
        %v234 = vmul.f32 %v217, %v233
        %v235 = vadd.f32 %v231, %v234
        %s236 = sld [smem:[#allocation2 + $0x3]]
        %v237 = vstv %s236
        %v238 = vmul.f32 %v219, %v237
        %v239 = vadd.f32 %v235, %v238
        %s240 = sld [smem:[#allocation2 + $0x4]]
        %v241 = vstv %s240
        %v242 = vmul.f32 %v221, %v241
        %v243 = vadd.f32 %v239, %v242
        %244 = vst [vmem:[%s212] sm:$0xff] %v243
        %s245 = sld [smem:[#allocation2 + $0x80]]
        %v246 = vstv %s245
        %v247 = vmul.f32 %v213, %v246
        %s248 = sld [smem:[#allocation7 + $0x1]]
        %v249 = vstv %s248
        %v250 = vadd.f32 %v247, %v249
        %s251 = sld [smem:[#allocation2 + $0x81]]
        %v252 = vstv %s251
        %v253 = vmul.f32 %v215, %v252
        %v254 = vadd.f32 %v250, %v253
        %s255 = sld [smem:[#allocation2 + $0x82]]
        %v256 = vstv %s255
        %v257 = vmul.f32 %v217, %v256
        %v258 = vadd.f32 %v254, %v257
        %s259 = sld [smem:[#allocation2 + $0x83]]
        %v260 = vstv %s259
        %v261 = vmul.f32 %v219, %v260
        %v262 = vadd.f32 %v258, %v261
        %s263 = sld [smem:[#allocation2 + $0x84]]
        %v264 = vstv %s263
        %v265 = vmul.f32 %v221, %v264
        %v266 = vadd.f32 %v262, %v265
        %s267 = scalar_lea.vmem %s212, 8 [#allocation9]
        %268 = vst [vmem:[%s267] sm:$0xff] %v266
        %s269 = sld [smem:[#allocation2 + $0x100]]
        %v270 = vstv %s269
        %v271 = vmul.f32 %v213, %v270
        %s272 = sld [smem:[#allocation7 + $0x2]]
        %v273 = vstv %s272
        %v274 = vadd.f32 %v271, %v273
        %s275 = sld [smem:[#allocation2 + $0x101]]
        %v276 = vstv %s275
        %v277 = vmul.f32 %v215, %v276
        %v278 = vadd.f32 %v274, %v277
        %s279 = sld [smem:[#allocation2 + $0x102]]
        %v280 = vstv %s279
        %v281 = vmul.f32 %v217, %v280
        %v282 = vadd.f32 %v278, %v281
        %s283 = sld [smem:[#allocation2 + $0x103]]
        %v284 = vstv %s283
        %v285 = vmul.f32 %v219, %v284
        %v286 = vadd.f32 %v282, %v285
        %s287 = sld [smem:[#allocation2 + $0x104]]
        %v288 = vstv %s287
        %v289 = vmul.f32 %v221, %v288
        %v290 = vadd.f32 %v286, %v289
        %s291 = scalar_lea.vmem %s212, 16 [#allocation9]
        %292 = vst [vmem:[%s291] sm:$0xff] %v290
        %s293 = sld [smem:[#allocation2 + $0x180]]
        %v294 = vstv %s293
        %v295 = vmul.f32 %v213, %v294
        %s296 = sld [smem:[#allocation7 + $0x3]]
        %v297 = vstv %s296
        %v298 = vadd.f32 %v295, %v297
        %s299 = sld [smem:[#allocation2 + $0x181]]
        %v300 = vstv %s299
        %v301 = vmul.f32 %v215, %v300
        %v302 = vadd.f32 %v298, %v301
        %s303 = sld [smem:[#allocation2 + $0x182]]
        %v304 = vstv %s303
        %v305 = vmul.f32 %v217, %v304
        %v306 = vadd.f32 %v302, %v305
        %s307 = sld [smem:[#allocation2 + $0x183]]
        %v308 = vstv %s307
        %v309 = vmul.f32 %v219, %v308
        %v310 = vadd.f32 %v306, %v309
        %s311 = sld [smem:[#allocation2 + $0x184]]
        %v312 = vstv %s311
        %v313 = vmul.f32 %v221, %v312
        %v314 = vadd.f32 %v310, %v313
        %s315 = scalar_lea.vmem %s212, 24 [#allocation9]
        %316 = vst [vmem:[%s315] sm:$0xff] %v314
        %s317 = sand.u32 %s98, 1
        %s318 = scalar_lea.sflag [#allocation4], %s317
        %s319 = sand.u32 %s98, 1
        %s320 = smul.addr %s319, 32
        %s321 = scalar_lea.vmem [#allocation9], %s320
        // Predicated region
        $region45: #{tpu_custom_call.1} parent=31 // pred_check
          %p322 = pneg %p108
        $region46: #{tpu_custom_call.1} parent=31 // pred_check_branch
          %324 = sbr.rel (%p322) target = $region48
        $region47: #{tpu_custom_call.1} parent=31 // pred_region
          %s326 = ssub.s32 512, 512
          %327 = vsyncadd %s318, %s326
          %s328 = smul.addr %s22, 128
          %s329 = scalar_lea.hbm %s3, %s328
          %s330 = sshll.u32 %s321, 4
          %s331 = int_to_ptr.vmem [resolvable:$true] %s330
          %336 = dma.vmem_to_hbm [thread:$0]  %s331, 512, %s329, %s318, 128, 256, 8
        $region48: #{tpu_custom_call.1} parent=31 // pred_fallthru
          _
      $region32: #{tpu_custom_call.1} parent=5 // pred_fallthru
        _
      %p337 = scmp.le.s32.totalorder 2, %s17
      // Predicated region
      $region49: #{tpu_custom_call.1} parent=5 // pred_check
        %p338 = pneg %p337
      $region50: #{tpu_custom_call.1} parent=5 // pred_check_branch
        %340 = sbr.rel (%p338) target = $region52
      $region51: #{tpu_custom_call.1} parent=5 // pred_region
        %s341 = ssub.s32 %s17, 2
        // Predicated region
        $region53: #{tpu_custom_call.1} parent=51 // pred_check
          %p342 = pneg %p114
        $region54: #{tpu_custom_call.1} parent=51 // pred_check_branch
          %344 = sbr.rel (%p342) target = $region56
        $region55: #{tpu_custom_call.1} parent=51 // pred_region
          %s345 = sand.u32 %s99, 1
          %s346 = scalar_lea.sflag [#allocation4], %s345
          %s347 = sand.u32 %s99, 1
          %s348 = smul.addr %s347, 32
          %s349 = scalar_lea.vmem [#allocation9], %s348
          %350 = dma.done %s346, 512
        $region56: #{tpu_custom_call.1} parent=51 // pred_fallthru
          _
      $region52: #{tpu_custom_call.1} parent=5 // pred_fallthru
        _
    $region6: #{tpu_custom_call.1} parent=1 // loop_footer
      %s21 = sadd.s32 1, %s17
    $region7: #{tpu_custom_call.1} parent=1 // loop_footer_branch
      %16 = sbr.rel target = $region3
    $region8: #{tpu_custom_call.1} parent=1 // loop_exit
      _
    %351 = vsyncpa [#allocation3], 1
    %s352 = scalar_lea.sflag [#allocation3], 1
    %353 = vsyncpa %s352, 1
    %354 = vsyncpa [#allocation4], 1
    %s355 = scalar_lea.sflag [#allocation4], 1
    %356 = vsyncpa %s355, 1
    %357 = vsyncpa [#allocation5], 1
    %s358 = scalar_lea.sflag [#allocation5], 1
    %359 = vsyncpa %s358, 1
    %360 = vsyncpa [#allocation6], 1
    %s361 = scalar_lea.sflag [#allocation6], 1
    %362 = vsyncpa %s361, 1

</llo_original>
